<compile_context>
chip_gen: v7x
topology: tpu7x:2x2x1
jax: 0.10.0
libtpu: 0.0.40
codegen_flags: <defaults>
</compile_context>

<pallas_src>
import jax
import jax.numpy as jnp
from jax import lax
from jax.experimental import pallas as pl
from jax.experimental.pallas import tpu as pltpu


# ---------------------------------------------------------------------------
# helpers
# ---------------------------------------------------------------------------
def _round_up(x, m):
    return ((x + m - 1) // m) * m


def _pick_batch_tile(b_pad, max_tile):
    """Largest divisor of b_pad that is a multiple of 16 (bf16 sublane pack) and
    <= max_tile; falls back to the full dimension (always legal as a block)."""
    if b_pad <= max_tile:
        return b_pad
    cands = [tb for tb in range(16, b_pad, 16)
             if b_pad % tb == 0 and tb <= max_tile]
    return max(cands) if cands else b_pad


def _vmem_limit(block_bytes):
    # double-buffered blocks + headroom, clamped to v7x's 64 MiB physical VMEM
    return int(min(max(2 * block_bytes + (8 << 20), 24 << 20), 64 << 20))


# ---------------------------------------------------------------------------
# Kernel 1: batched  x @ W + b  (hoisted input-to-gate projections; big MXU
# row tiles, row-parallel grid)
# ---------------------------------------------------------------------------
def _matmul_bias_kernel(x_ref, w_ref, b_ref, o_ref):
    acc = jnp.dot(x_ref[...], w_ref[...], preferred_element_type=jnp.float32)
    o_ref[...] = (acc + b_ref[...]).astype(o_ref.dtype)


def matmul_bias(x, w, b, row_tile=256, out_dtype=jnp.float32):
    M, K = x.shape
    N = w.shape[1]
    row_tile = min(row_tile, _round_up(M, 32))
    pad = (-M) % row_tile
    if pad:
        x = jnp.pad(x, ((0, pad), (0, 0)))
    Mp = M + pad
    block_bytes = (row_tile * K * x.dtype.itemsize
                   + K * N * w.dtype.itemsize
                   + N * 4
                   + row_tile * N * jnp.dtype(out_dtype).itemsize)
    out = pl.pallas_call(
        _matmul_bias_kernel,
        out_shape=jax.ShapeDtypeStruct((Mp, N), out_dtype),
        grid_spec=pltpu.PrefetchScalarGridSpec(
            num_scalar_prefetch=0,
            grid=(Mp // row_tile,),
            in_specs=[
                pl.BlockSpec((row_tile, K), lambda i: (i, 0)),
                pl.BlockSpec((K, N), lambda i: (0, 0)),
                pl.BlockSpec((1, N), lambda i: (0, 0)),
            ],
            out_specs=pl.BlockSpec((row_tile, N), lambda i: (i, 0)),
        ),
        compiler_params=pltpu.CompilerParams(
            dimension_semantics=("parallel",),
            vmem_limit_bytes=_vmem_limit(block_bytes)),
    )(x, w, b)
    return out[:M]


# ---------------------------------------------------------------------------
# Kernel 2: encoder GRU recurrence — batch-tiled grid ("parallel" for v7x's
# two TensorCores), in-kernel time loop with bounded unroll. gi (input gates,
# bias folded in) is precomputed; only gh depends on the recurrence.
# ---------------------------------------------------------------------------
def _enc_gru_scan_kernel(gi_ref, whh_ref, bhh_ref, out_ref):
    T, B, _ = gi_ref.shape
    H = whh_ref.shape[0]
    w_hh = whh_ref[...]                        # (H, 3H) bf16, resident
    b_hh = bhh_ref[...]                        # (1, 3H) f32

    def step(t, h):
        gi = gi_ref[t].astype(jnp.float32)     # (B, 3H)
        gh = jnp.dot(h.astype(jnp.bfloat16), w_hh,
                     preferred_element_type=jnp.float32) + b_hh
        r = jax.nn.sigmoid(gi[:, 0 * H:1 * H] + gh[:, 0 * H:1 * H])
        z = jax.nn.sigmoid(gi[:, 1 * H:2 * H] + gh[:, 1 * H:2 * H])
        n = jnp.tanh(gi[:, 2 * H:3 * H] + r * gh[:, 2 * H:3 * H])
        h_new = (1.0 - z) * n + z * h
        out_ref[t] = h_new.astype(out_ref.dtype)
        return h_new

    lax.fori_loop(0, T, step, jnp.zeros((B, H), jnp.float32),
                  unroll=min(T, 8))


def encoder_gru(gi, w_hh, b_hh):
    T, B_pad, G = gi.shape
    H = w_hh.shape[0]
    tile_b = _pick_batch_tile(B_pad, max(16, B_pad // 2))
    nb = B_pad // tile_b
    block_bytes = (T * tile_b * G * gi.dtype.itemsize
                   + H * G * 2 + G * 4
                   + T * tile_b * H * 2)
    # TODO(synk): for very large T/B/H, stream gi/out over the time axis
    # (pltpu.emit_pipeline) instead of whole-sequence VMEM residency.
    return pl.pallas_call(
        _enc_gru_scan_kernel,
        out_shape=jax.ShapeDtypeStruct((T, B_pad, H), jnp.bfloat16),
        grid_spec=pltpu.PrefetchScalarGridSpec(
            num_scalar_prefetch=0,
            grid=(nb,),
            in_specs=[
                pl.BlockSpec((T, tile_b, G), lambda b: (0, b, 0)),
                pl.BlockSpec((H, G), lambda b: (0, 0)),
                pl.BlockSpec((1, G), lambda b: (0, 0)),
            ],
            out_specs=pl.BlockSpec((T, tile_b, H), lambda b: (0, b, 0)),
        ),
        compiler_params=pltpu.CompilerParams(
            dimension_semantics=("parallel",),
            vmem_limit_bytes=_vmem_limit(block_bytes)),
    )(gi, w_hh, b_hh)


# ---------------------------------------------------------------------------
# Kernel 3: decoder — fused tanh(Linear) bridge + attention GRU recurrence.
# enc is relayouted once in the prologue; per-step work is MXU dots + f32
# gate math only. Emits bf16 hidden states (Tt, B, H).
# ---------------------------------------------------------------------------
def _dec_attn_gru_scan_kernel(gi_ref, enc_ref, linw_ref, linb_ref,
                              wic_ref, whh_ref, bhh_ref, out_ref):
    T, B, _ = gi_ref.shape
    H = whh_ref.shape[0]
    Ts = enc_ref.shape[1]

    enc = enc_ref[...]                                   # (B, Ts, H) bf16, resident
    # one-time relayout (f32 transpose is layout-safe), hoisted off the time loop
    enc_T = jnp.transpose(enc.astype(jnp.float32),
                          (0, 2, 1)).astype(jnp.bfloat16)  # (B, H, Ts)
    w_ic = wic_ref[...]                                  # (H, 3H) bf16
    w_hh = whh_ref[...]                                  # (H, 3H) bf16
    b_hh = bhh_ref[...]                                  # (1, 3H) f32

    # Fused bridge: dec_h0 = tanh(Linear(enc_h_t[-1]))
    enc_last = enc[:, Ts - 1, :]                         # (B, H) bf16
    h0 = jnp.tanh(
        jnp.dot(enc_last, linw_ref[...], preferred_element_type=jnp.float32)
        + linb_ref[...])

    def step(t, h):
        hb = h.astype(jnp.bfloat16)                      # single cast, reused
        # --- dot-product attention over source positions (MXU-native) ---
        s = jnp.einsum('bqh,bhk->bqk', hb[:, None, :], enc_T,
                       preferred_element_type=jnp.float32)          # (B,1,Ts)
        s = s - jnp.max(s, axis=-1, keepdims=True)
        e = jnp.exp(s)
        alpha = e * pl.reciprocal(jnp.sum(e, axis=-1, keepdims=True),
                                  approx=True)
        ctx = jnp.einsum('bqk,bkh->bqh', alpha.astype(jnp.bfloat16), enc,
                         preferred_element_type=jnp.float32)[:, 0, :]  # (B,H)

        # --- GRU step; embedding-side gates precomputed (gi_ref) ---
        gi = gi_ref[t].astype(jnp.float32) + jnp.dot(
            ctx.astype(jnp.bfloat16), w_ic, preferred_element_type=jnp.float32)
        gh = jnp.dot(hb, w_hh, preferred_element_type=jnp.float32) + b_hh
        r = jax.nn.sigmoid(gi[:, 0 * H:1 * H] + gh[:, 0 * H:1 * H])
        z = jax.nn.sigmoid(gi[:, 1 * H:2 * H] + gh[:, 1 * H:2 * H])
        n = jnp.tanh(gi[:, 2 * H:3 * H] + r * gh[:, 2 * H:3 * H])
        h_new = (1.0 - z) * n + z * h
        out_ref[t] = h_new.astype(out_ref.dtype)
        return h_new

    lax.fori_loop(0, T, step, h0, unroll=min(T, 8))


def decoder_attn_gru(gi, enc_battn, lin_w, lin_b, w_ic, w_hh, b_hh):
    T, B_pad, G = gi.shape
    H = w_hh.shape[0]
    Ts = enc_battn.shape[1]
    tile_b = _pick_batch_tile(B_pad, max(16, B_pad // 2))
    nb = B_pad // tile_b
    block_bytes = (T * tile_b * G * gi.dtype.itemsize
                   + 3 * tile_b * Ts * H * 2            # enc + relayout temp
                   + 2 * H * G * 2 + H * H * 2 + (G + H) * 4
                   + T * tile_b * H * 2)
    return pl.pallas_call(
        _dec_attn_gru_scan_kernel,
        out_shape=jax.ShapeDtypeStruct((T, B_pad, H), jnp.bfloat16),
        grid_spec=pltpu.PrefetchScalarGridSpec(
            num_scalar_prefetch=0,
            grid=(nb,),
            in_specs=[
                pl.BlockSpec((T, tile_b, G), lambda b: (0, b, 0)),
                pl.BlockSpec((tile_b, Ts, H), lambda b: (b, 0, 0)),
                pl.BlockSpec((H, H), lambda b: (0, 0)),
                pl.BlockSpec((1, H), lambda b: (0, 0)),
                pl.BlockSpec((H, G), lambda b: (0, 0)),
                pl.BlockSpec((H, G), lambda b: (0, 0)),
                pl.BlockSpec((1, G), lambda b: (0, 0)),
            ],
            out_specs=pl.BlockSpec((T, tile_b, H), lambda b: (0, b, 0)),
        ),
        compiler_params=pltpu.CompilerParams(
            dimension_semantics=("parallel",),
            vmem_limit_bytes=_vmem_limit(block_bytes)),
    )(gi, enc_battn, lin_w, lin_b, w_ic, w_hh, b_hh)


# ---------------------------------------------------------------------------
# Kernel 4: fused batch-major relayout + output projection + log_softmax.
# Consumes dec_hid (Tt, B_pad, H) directly (no wrapper transpose of the
# activations); output rows are (b, t) batch-major, lane-dense over V.
# ---------------------------------------------------------------------------
def _proj_logsoftmax_kernel(h_ref, w_ref, b_ref, o_ref):
    T, tb, H = h_ref.shape
    # relayout (T, tb, H) -> (tb*T, H) once per tile, on f32 (8-row sublane
    # tiles; T is padded to a multiple of 8 so the merge is layout-preserving)
    rows = jnp.transpose(h_ref[...].astype(jnp.float32), (1, 0, 2))
    rows = rows.reshape(tb * T, H).astype(jnp.bfloat16)
    logits = (jnp.dot(rows, w_ref[...], preferred_element_type=jnp.float32)
              + b_ref[...])
    m = jnp.max(logits, axis=-1, keepdims=True)
    s = logits - m
    lse = jnp.log(jnp.sum(jnp.exp(s), axis=-1, keepdims=True))
    o_ref[...] = s - lse


def proj_logsoftmax(dec_hid, w, b, n_batch, target_rows=256):
    """dec_hid: (Tt, B_pad, H) bf16. Returns (n_batch*Tt, V) log-probs,
    rows ordered batch-major like out.view(-1, trg_nword)."""
    T, B_pad, H = dec_hid.shape
    V = w.shape[1]
    T_pad = _round_up(T, 8)
    if T_pad != T:
        dec_hid = jnp.pad(dec_hid, ((0, T_pad - T), (0, 0), (0, 0)))
    tile_b = _pick_batch_tile(B_pad, max(16, max(target_rows // T_pad, 1)))
    nb = B_pad // tile_b
    rows_per_block = tile_b * T_pad
    block_bytes = (T_pad * tile_b * H * 2
                   + H * V * w.dtype.itemsize + V * 4
                   + rows_per_block * V * 4
                   + 2 * rows_per_block * H * 4)
    out = pl.pallas_call(
        _proj_logsoftmax_kernel,
        out_shape=jax.ShapeDtypeStruct((B_pad * T_pad, V), jnp.float32),
        grid_spec=pltpu.PrefetchScalarGridSpec(
            num_scalar_prefetch=0,
            grid=(nb,),
            in_specs=[
                pl.BlockSpec((T_pad, tile_b, H), lambda i: (0, i, 0)),
                pl.BlockSpec((H, V), lambda i: (0, 0)),
                pl.BlockSpec((1, V), lambda i: (0, 0)),
            ],
            out_specs=pl.BlockSpec((rows_per_block, V), lambda i: (i, 0)),
        ),
        compiler_params=pltpu.CompilerParams(
            dimension_semantics=("parallel",),
            vmem_limit_bytes=_vmem_limit(block_bytes)),
    )(dec_hid, w, b)
    # TODO(synk): for production vocabs (V ~ 32k) tile V with a second
    # "arbitrary" grid axis + two-pass max/sum so only an (H, tile_V) weight
    # block is resident (needed to fit v7x's 64 MiB VMEM).
    out = out.reshape(B_pad, T_pad, V)[:n_batch, :T].reshape(n_batch * T, V)
    return out


# ---------------------------------------------------------------------------
# Parameter init + full forward (glue in plain JAX, hot path in Pallas)
# ---------------------------------------------------------------------------
def init_params(key, src_nword, trg_nword, embed_dim, hidden_dim):
    ks = jax.random.split(key, 9)
    s = 0.1
    bf, f32 = jnp.bfloat16, jnp.float32

    def rnd(k, shape):  # matmul operands stored bf16 (MXU inputs); biases f32
        return (s * jax.random.normal(k, shape, f32)).astype(bf)

    return {
        "src_embed": rnd(ks[0], (src_nword, embed_dim)),
        "enc_w_ih": rnd(ks[1], (embed_dim, 3 * hidden_dim)),
        "enc_w_hh": rnd(ks[2], (hidden_dim, 3 * hidden_dim)),
        "enc_b_ih": jnp.zeros((1, 3 * hidden_dim), f32),
        "enc_b_hh": jnp.zeros((1, 3 * hidden_dim), f32),
        "lin_w": rnd(ks[3], (hidden_dim, hidden_dim)),
        "lin_b": jnp.zeros((1, hidden_dim), f32),
        "trg_embed": rnd(ks[4], (trg_nword, embed_dim)),
        "dec_w_ie": rnd(ks[5], (embed_dim, 3 * hidden_dim)),
        "dec_w_ic": rnd(ks[6], (hidden_dim, 3 * hidden_dim)),
        "dec_w_hh": rnd(ks[7], (hidden_dim, 3 * hidden_dim)),
        "dec_b_ih": jnp.zeros((1, 3 * hidden_dim), f32),
        "dec_b_hh": jnp.zeros((1, 3 * hidden_dim), f32),
        "out_w": rnd(ks[8], (hidden_dim, trg_nword)),
        "out_b": jnp.zeros((1, trg_nword), f32),
    }


def seq2seq_forward(params, source, target, trg_soi):
    # source, target: (B, T) int32, batch-first like the PyTorch module
    B, Ts = source.shape
    Tt = target.shape[1]
    B_pad = _round_up(B, 8)
    bpad = B_pad - B
    H = params["enc_w_hh"].shape[0]

    # --- Encoder: hoisted input-to-gate projection, then recurrent kernel ---
    src_emb = jnp.take(params["src_embed"], source, axis=0)            # (B, Ts, E) bf16
    src_emb = jnp.pad(src_emb, ((0, bpad), (0, 0), (0, 0)))            # (B_pad, Ts, E)
    src_emb = jnp.transpose(src_emb, (1, 0, 2))                        # (Ts, B_pad, E)
    E = src_emb.shape[-1]
    gi_enc = matmul_bias(src_emb.reshape(Ts * B_pad, E),
                         params["enc_w_ih"], params["enc_b_ih"],
                         row_tile=256, out_dtype=jnp.bfloat16
                         ).reshape(Ts, B_pad, 3 * H)
    enc_h = encoder_gru(gi_enc, params["enc_w_hh"],
                        params["enc_b_hh"])                            # (Ts, B_pad, H) bf16

    # --- Decoder (teacher forcing: [SOS, target[:-1]]); bridge fused in-kernel
    dec_in = jnp.concatenate(
        [jnp.full((B, 1), trg_soi, dtype=target.dtype), target[:, :-1]], axis=1)
    y_emb = jnp.take(params["trg_embed"], dec_in, axis=0)              # (B, Tt, E) bf16
    y_emb = jnp.pad(y_emb, ((0, bpad), (0, 0), (0, 0)))
    y_emb = jnp.transpose(y_emb, (1, 0, 2))                            # (Tt, B_pad, E)
    gi_dec = matmul_bias(y_emb.reshape(Tt * B_pad, E),
                         params["dec_w_ie"], params["dec_b_ih"],
                         row_tile=256, out_dtype=jnp.bfloat16
                         ).reshape(Tt, B_pad, 3 * H)
    enc_for_attn = jnp.transpose(enc_h, (1, 0, 2))                     # (B_pad, Ts, H) bf16
    dec_hid = decoder_attn_gru(
        gi_dec, enc_for_attn,
        params["lin_w"], params["lin_b"],
        params["dec_w_ic"], params["dec_w_hh"],
        params["dec_b_hh"])                                            # (Tt, B_pad, H) bf16

    # --- out.view(-1, trg_nword) + log_softmax, fused with the projection ---
    return proj_logsoftmax(dec_hid, params["out_w"], params["out_b"], B)


if __name__ == "__main__":
    # small but lane-dense config (E, H, 3H, V multiples of 128)
    src_nword, trg_nword = 50, 256
    num_layer, embed_dim, hidden_dim = 1, 128, 128
    max_len, trg_soi = 8, 1
    batch, src_len = 2, 8

    key = jax.random.PRNGKey(0)
    kp, ks, kt = jax.random.split(key, 3)
    params = init_params(kp, src_nword, trg_nword, embed_dim, hidden_dim)

    source = jax.random.randint(ks, (batch, src_len), 0, src_nword, dtype=jnp.int32)
    target = jax.random.randint(kt, (batch, max_len), 0, trg_nword, dtype=jnp.int32)

    out = seq2seq_forward(params, source, target, trg_soi)
    out = jax.block_until_ready(out)
    assert out.shape == (batch * max_len, trg_nword)
    assert bool(jnp.all(jnp.isfinite(out)))
    print("KERNEL_OK")
</pallas_src>

<mosaic_0001>
module attributes {stable_mosaic.version = 11 : i64} {
  func.func @_matmul_bias_kernel(%arg0: i32, %arg1: memref<64x128xbf16, #tpu.memory_space<vmem>>, %arg2: memref<128x384xbf16, #tpu.memory_space<vmem>>, %arg3: memref<1x384xf32, #tpu.memory_space<vmem>>, %arg4: memref<64x384xbf16, #tpu.memory_space<vmem>>) attributes {dimension_semantics = [#tpu.dimension_semantics<parallel>], iteration_bounds = array<i64: 1>, scalar_prefetch = 0 : i64, scratch_operands = 0 : i64, tpu.core_type = #tpu.core_type<tc>, window_params = [{transform_indices = @transform_0, window_bounds = array<i64: 64, 128>}, {pipeline_mode = #tpu.pipeline_mode<synchronous>, transform_indices = @transform_1, window_bounds = array<i64: 128, 384>}, {pipeline_mode = #tpu.pipeline_mode<synchronous>, transform_indices = @transform_2, window_bounds = array<i64: 1, 384>}, {transform_indices = @transform_3, window_bounds = array<i64: 64, 384>}]} {
    %c0 = arith.constant 0 : index
    %c0_0 = arith.constant 0 : index
    %0 = vector.load %arg1[%c0, %c0_0] : memref<64x128xbf16, #tpu.memory_space<vmem>>, vector<64x128xbf16>
    %c0_1 = arith.constant 0 : index
    %c0_2 = arith.constant 0 : index
    %1 = vector.load %arg2[%c0_1, %c0_2] : memref<128x384xbf16, #tpu.memory_space<vmem>>, vector<128x384xbf16>
    %cst = arith.constant dense<0.000000e+00> : vector<64x384xf32>
    %2 = tpu.matmul %0, %1, %cst {dimension_numbers = #tpu.dot_dimension_numbers<[1], [0], [0], [1], [0, 0, 1, 1], [], []>} : vector<64x128xbf16>, vector<128x384xbf16>, vector<64x384xf32> -> vector<64x384xf32>
    %c0_3 = arith.constant 0 : index
    %c0_4 = arith.constant 0 : index
    %3 = vector.load %arg3[%c0_3, %c0_4] : memref<1x384xf32, #tpu.memory_space<vmem>>, vector<1x384xf32>
    %4 = vector.broadcast %3 : vector<1x384xf32> to vector<64x384xf32>
    %5 = arith.addf %2, %4 : vector<64x384xf32>
    %6 = arith.truncf %5 : vector<64x384xf32> to vector<64x384xbf16>
    %c0_5 = arith.constant 0 : index
    %c0_6 = arith.constant 0 : index
    %7 = vector.load %arg4[%c0_5, %c0_6] : memref<64x384xbf16, #tpu.memory_space<vmem>>, vector<64x384xbf16>
    tpu.vector_store %arg4[%c0_5, %c0_6], %6 {strides = array<i32>} : memref<64x384xbf16, #tpu.memory_space<vmem>>, vector<64x384xbf16>,
    return
  }
  func.func @transform_0(%arg0: i32) -> (i32, i32) {
    %c0_i32 = arith.constant 0 : i32
    %c0_i32_0 = arith.constant 0 : i32
    return %arg0, %c0_i32 : i32, i32
  }
  func.func @transform_1(%arg0: i32) -> (i32, i32) {
    %c0_i32 = arith.constant 0 : i32
    %c0_i32_0 = arith.constant 0 : i32
    %c0_i32_1 = arith.constant 0 : i32
    return %c0_i32, %c0_i32_0 : i32, i32
  }
  func.func @transform_2(%arg0: i32) -> (i32, i32) {
    %c0_i32 = arith.constant 0 : i32
    %c0_i32_0 = arith.constant 0 : i32
    %c0_i32_1 = arith.constant 0 : i32
    return %c0_i32, %c0_i32_0 : i32, i32
  }
  func.func @transform_3(%arg0: i32) -> (i32, i32) {
    %c0_i32 = arith.constant 0 : i32
    %c0_i32_0 = arith.constant 0 : i32
    return %arg0, %c0_i32 : i32, i32
  }
}

</mosaic_0001>

<llo_original>
// kernel: tpu_custom_call.1
$region0: #{tpu_custom_call.1}
  #allocation0 [shape = 'u32[]', space=smem, size = 0x4, offset = 0x4, fixed_abs, tag = 'smem constant byte address 0x4 - core index']
  #allocation1 [shape = 'u32[144,128]{1,0:T(1,128)}', space=vmem, size = 0x12000, scoped, tag = 'internal scratch']
  %s0 = inlined_call_operand.hbm [shape: bf16[64,128], index: 0, kind: input, shape index: {}]
  %s1 = inlined_call_operand.hbm [shape: bf16[128,384], index: 1, kind: input, shape index: {}]
  %s2 = inlined_call_operand.vmem [shape: f32[1,384], index: 2, kind: input, shape index: {}]
  %s3 = inlined_call_operand.hbm [shape: bf16[64,384], index: 3, kind: output, shape index: {}]
  %s4 = sld [smem:[#allocation0]]
  $region30: #{tpu_custom_call.1} parent=0
    _
  %s6 = ssub.s32 1, %s4
  %s7 = scalar_select 0, %s6, %s4
  $region1: #{tpu_custom_call.1} parent=0
    #allocation2 [shape = 'u8[16384]{0}', space=vmem, size = 0x4000, scoped, tag = 'input window, operand 0, single buffered']
    #allocation3 [shape = 's32[1]{0}', space=sflag, size = 0x4, scoped, tag = 'scoped memory for tpu_custom_call.1']
    #allocation4 [shape = 's32[1]{0}', space=sflag, size = 0x4, scoped, tag = 'scoped memory for tpu_custom_call.1']
    #allocation5 [shape = 'u8[98304]{0}', space=vmem, size = 0x18000, scoped, tag = 'input window, operand 1, single buffered']
    #allocation6 [shape = 's32[1]{0}', space=sflag, size = 0x4, scoped, tag = 'scoped memory for tpu_custom_call.1']
    #allocation7 [shape = 'u8[49152]{0}', space=vmem, size = 0xc000, scoped, tag = 'output window, operand 0, single buffered']
    %8 = vsyncpa [#allocation3], 0
    %9 = vsyncpa [#allocation6], 0
    %10 = vsyncpa [#allocation4], 0
    // Predicated region
    $region2: #{tpu_custom_call.1} parent=1 // pred_check
      _
    $region3: #{tpu_custom_call.1} parent=1 // pred_check_branch
      %12 = sbr.rel (0) target = $region5
    $region4: #{tpu_custom_call.1} parent=1 // pred_region
      %s14 = ssub.s32 512, 512
      %15 = vsyncadd [#allocation3], %s14
      %s16 = sshll.u32 [#allocation2], 4
      %s17 = int_to_ptr.vmem [resolvable:$true] %s16
      %22 = dma.hbm_to_vmem [thread:$0]  %s0, 512, %s17, [#allocation3], 64, 64, 4
    $region5: #{tpu_custom_call.1} parent=1 // pred_fallthru
      _
    // Predicated region
    $region6: #{tpu_custom_call.1} parent=1 // pred_check
      _
    $region7: #{tpu_custom_call.1} parent=1 // pred_check_branch
      %24 = sbr.rel (0) target = $region9
    $region8: #{tpu_custom_call.1} parent=1 // pred_region
      %s26 = ssub.s32 3072, 3072
      %27 = vsyncadd [#allocation6], %s26
      %s28 = sshll.u32 [#allocation5], 4
      %s29 = int_to_ptr.vmem [resolvable:$true] %s28
      %34 = dma.hbm_to_vmem [thread:$0]  %s1, 3072, %s29, [#allocation6], 192, 192, 12
    $region9: #{tpu_custom_call.1} parent=1 // pred_fallthru
      _
    // Predicated region
    $region10: #{tpu_custom_call.1} parent=1 // pred_check
      _
    $region11: #{tpu_custom_call.1} parent=1 // pred_check_branch
      %36 = sbr.rel (0) target = $region13
    $region12: #{tpu_custom_call.1} parent=1 // pred_region
      _
    $region13: #{tpu_custom_call.1} parent=1 // pred_fallthru
      _
    // Predicated region
    $region14: #{tpu_custom_call.1} parent=1 // pred_check
      _
    $region15: #{tpu_custom_call.1} parent=1 // pred_check_branch
      %38 = sbr.rel (0) target = $region17
    $region16: #{tpu_custom_call.1} parent=1 // pred_region
      %39 = dma.done [#allocation3], 512
    $region17: #{tpu_custom_call.1} parent=1 // pred_fallthru
      _
    // Predicated region
    $region18: #{tpu_custom_call.1} parent=1 // pred_check
      _
    $region19: #{tpu_custom_call.1} parent=1 // pred_check_branch
      %41 = sbr.rel (0) target = $region21
    $region20: #{tpu_custom_call.1} parent=1 // pred_region
      %42 = dma.done [#allocation6], 3072
    $region21: #{tpu_custom_call.1} parent=1 // pred_fallthru
      _
    %v44 = vld [vmem:[#allocation2] sm:$0xf]
    %v45 = vld [vmem:[#allocation2 + $0x4] sm:$0xf]
    %v46 = vld [vmem:[#allocation2 + $0x8] sm:$0xf]
    %v47 = vld [vmem:[#allocation2 + $0xc] sm:$0xf]
    %v48 = vld [vmem:[#allocation2 + $0x10] sm:$0xf]
    %v49 = vld [vmem:[#allocation2 + $0x14] sm:$0xf]
    %v50 = vld [vmem:[#allocation2 + $0x18] sm:$0xf]
    %v51 = vld [vmem:[#allocation2 + $0x1c] sm:$0xf]
    %v52 = vld [vmem:[#allocation5] sm:$0xff]
    %v53 = vld [vmem:[#allocation5 + $0x8] sm:$0xf]
    %v54 = vld [vmem:[#allocation5 + $0xc] sm:$0xff]
    %v55 = vld [vmem:[#allocation5 + $0x14] sm:$0xf]
    %v56 = vld [vmem:[#allocation5 + $0x18] sm:$0xff]
    %v57 = vld [vmem:[#allocation5 + $0x20] sm:$0xf]
    %v58 = vld [vmem:[#allocation5 + $0x24] sm:$0xff]
    %v59 = vld [vmem:[#allocation5 + $0x2c] sm:$0xf]
    %v60 = vld [vmem:[#allocation5 + $0x30] sm:$0xff]
    %v61 = vld [vmem:[#allocation5 + $0x38] sm:$0xf]
    %v62 = vld [vmem:[#allocation5 + $0x3c] sm:$0xff]
    %v63 = vld [vmem:[#allocation5 + $0x44] sm:$0xf]
    %v64 = vld [vmem:[#allocation5 + $0x48] sm:$0xff]
    %v65 = vld [vmem:[#allocation5 + $0x50] sm:$0xf]
    %v66 = vld [vmem:[#allocation5 + $0x54] sm:$0xff]
    %v67 = vld [vmem:[#allocation5 + $0x5c] sm:$0xf]
    %v68 = vld [vmem:[#allocation5 + $0x60] sm:$0xff]
    %v69 = vld [vmem:[#allocation5 + $0x68] sm:$0xf]
    %v70 = vld [vmem:[#allocation5 + $0x6c] sm:$0xff]
    %v71 = vld [vmem:[#allocation5 + $0x74] sm:$0xf]
    %v72 = vld [vmem:[#allocation5 + $0x78] sm:$0xff]
    %v73 = vld [vmem:[#allocation5 + $0x80] sm:$0xf]
    %v74 = vld [vmem:[#allocation5 + $0x84] sm:$0xff]
    %v75 = vld [vmem:[#allocation5 + $0x8c] sm:$0xf]
    %v76 = vld [vmem:[#allocation5 + $0x90] sm:$0xff]
    %v77 = vld [vmem:[#allocation5 + $0x98] sm:$0xf]
    %v78 = vld [vmem:[#allocation5 + $0x9c] sm:$0xff]
    %v79 = vld [vmem:[#allocation5 + $0xa4] sm:$0xf]
    %v80 = vld [vmem:[#allocation5 + $0xa8] sm:$0xff]
    %v81 = vld [vmem:[#allocation5 + $0xb0] sm:$0xf]
    %v82 = vld [vmem:[#allocation5 + $0xb4] sm:$0xff]
    %v83 = vld [vmem:[#allocation5 + $0xbc] sm:$0xf]
    %v84 = vld [vmem:[%s2] sm:$0x7]
    %v86 = vlaneseq
    %v87 = vshrl.u32 %v86, 7
    %v88 = vsub.s32 0, %v87
    %v89 = vrot.slane %v84, %v88
    %v90 = vlaneseq
    %v91 = vshrl.u32 %v90, 7
    %v92 = vsub.s32 1, %v91
    %v93 = vrot.slane %v84, %v92
    %v94 = vlaneseq
    %v95 = vshrl.u32 %v94, 7
    %v96 = vsub.s32 2, %v95
    %v97 = vrot.slane %v84, %v96
    %v109 = vunpack.c.l.b16 %v44
    %v110 = vunpack.c.l.b16 %v45
    %v111 = vunpack.c.l.b16 %v46
    %v112 = vunpack.c.l.b16 %v47
    %v113 = vunpack.c.l.b16 %v48
    %v114 = vunpack.c.l.b16 %v49
    %v115 = vunpack.c.l.b16 %v50
    %v116 = vunpack.c.l.b16 %v51
    %v117 = vpack.c.b16 %v110, %v109
    %v118 = vpack.c.b16 %v112, %v111
    %v119 = vpack.c.b16 %v114, %v113
    %v120 = vpack.c.b16 %v116, %v115
    %v157 = vunpack.c.l.b16 %v52
    %v158 = vunpack.c.h.b16 %v52
    %v159 = vunpack.c.l.b16 %v53
    %v160 = vunpack.c.l.b16 %v54
    %v161 = vunpack.c.h.b16 %v54
    %v162 = vunpack.c.l.b16 %v55
    %v163 = vunpack.c.l.b16 %v56
    %v164 = vunpack.c.h.b16 %v56
    %v165 = vunpack.c.l.b16 %v57
    %v166 = vunpack.c.l.b16 %v58
    %v167 = vunpack.c.h.b16 %v58
    %v168 = vunpack.c.l.b16 %v59
    %v169 = vunpack.c.l.b16 %v60
    %v170 = vunpack.c.h.b16 %v60
    %v171 = vunpack.c.l.b16 %v61
    %v172 = vunpack.c.l.b16 %v62
    %v173 = vunpack.c.h.b16 %v62
    %v174 = vunpack.c.l.b16 %v63
    %v175 = vunpack.c.l.b16 %v64
    %v176 = vunpack.c.h.b16 %v64
    %v177 = vunpack.c.l.b16 %v65
    %v178 = vunpack.c.l.b16 %v66
    %v179 = vunpack.c.h.b16 %v66
    %v180 = vunpack.c.l.b16 %v67
    %v181 = vunpack.c.l.b16 %v68
    %v182 = vunpack.c.h.b16 %v68
    %v183 = vunpack.c.l.b16 %v69
    %v184 = vunpack.c.l.b16 %v70
    %v185 = vunpack.c.h.b16 %v70
    %v186 = vunpack.c.l.b16 %v71
    %v187 = vunpack.c.l.b16 %v72
    %v188 = vunpack.c.h.b16 %v72
    %v189 = vunpack.c.l.b16 %v73
    %v190 = vunpack.c.l.b16 %v74
    %v191 = vunpack.c.h.b16 %v74
    %v192 = vunpack.c.l.b16 %v75
    %v193 = vunpack.c.l.b16 %v76
    %v194 = vunpack.c.h.b16 %v76
    %v195 = vunpack.c.l.b16 %v77
    %v196 = vunpack.c.l.b16 %v78
    %v197 = vunpack.c.h.b16 %v78
    %v198 = vunpack.c.l.b16 %v79
    %v199 = vunpack.c.l.b16 %v80
    %v200 = vunpack.c.h.b16 %v80
    %v201 = vunpack.c.l.b16 %v81
    %v202 = vunpack.c.l.b16 %v82
    %v203 = vunpack.c.h.b16 %v82
    %v204 = vunpack.c.l.b16 %v83
    %v205 = vpack.c.b16 %v160, %v157
    %v206 = vpack.c.b16 %v161, %v158
    %v207 = vpack.c.b16 %v162, %v159
    %v208 = vpack.c.b16 %v166, %v163
    %v209 = vpack.c.b16 %v167, %v164
    %v210 = vpack.c.b16 %v168, %v165
    %v211 = vpack.c.b16 %v172, %v169
    %v212 = vpack.c.b16 %v173, %v170
    %v213 = vpack.c.b16 %v174, %v171
    %v214 = vpack.c.b16 %v178, %v175
    %v215 = vpack.c.b16 %v179, %v176
    %v216 = vpack.c.b16 %v180, %v177
    %v217 = vpack.c.b16 %v184, %v181
    %v218 = vpack.c.b16 %v185, %v182
    %v219 = vpack.c.b16 %v186, %v183
    %v220 = vpack.c.b16 %v190, %v187
    %v221 = vpack.c.b16 %v191, %v188
    %v222 = vpack.c.b16 %v192, %v189
    %v223 = vpack.c.b16 %v196, %v193
    %v224 = vpack.c.b16 %v197, %v194
    %v225 = vpack.c.b16 %v198, %v195
    %v226 = vpack.c.b16 %v202, %v199
    %v227 = vpack.c.b16 %v203, %v200
    %v228 = vpack.c.b16 %v204, %v201
    %253 = vmatprep.subr.bf16.mxu0 %v206
    %254 = vmatpush1.bf16.msra.mxu0 %v205
    %255 = vmatprep.subr.bf16.mxu0 %v209
    %256 = vmatpush1.bf16.msra.mxu0 %v208
    %257 = vmatprep.subr.bf16.mxu0 %v212
    %258 = vmatpush1.bf16.msra.mxu0 %v211
    %259 = vmatprep.subr.bf16.mxu0 %v215
    %260 = vmatpush1.bf16.msra.mxu0 %v214
    %261 = vmatprep.subr.bf16.mxu0 %v218
    %262 = vmatpush1.bf16.msra.mxu0 %v217
    %263 = vmatprep.subr.bf16.mxu0 %v221
    %264 = vmatpush1.bf16.msra.mxu0 %v220
    %265 = vmatprep.subr.bf16.mxu0 %v224
    %266 = vmatpush1.bf16.msra.mxu0 %v223
    %267 = vmatprep.subr.bf16.mxu0 %v227
    %268 = vmatpush1.bf16.msra.mxu0 %v226
    %269 = vmatprep.subr.bf16.mxu0 0
    %270 = vmatpush1.bf16.msra.mxu0 0
    %271 = vmatprep.subr.bf16.mxu0 0
    %272 = vmatpush1.bf16.msra.mxu0 0
    %273 = vmatprep.subr.bf16.mxu0 0
    %274 = vmatpush1.bf16.msra.mxu0 0
    %275 = vmatprep.subr.bf16.mxu0 0
    %276 = vmatpush1.bf16.msra.mxu0 0
    %277 = vmatprep.subr.bf16.mxu0 0
    %278 = vmatpush1.bf16.msra.mxu0 0
    %279 = vmatprep.subr.bf16.mxu0 0
    %280 = vmatpush1.bf16.msra.mxu0 0
    %281 = vmatprep.subr.bf16.mxu0 0
    %282 = vmatpush1.bf16.msra.mxu0 0
    %283 = vmatprep.subr.bf16.mxu0 0
    %284 = vmatpush1.bf16.msra.mxu0 0
    %285 = vmatprep.mubr.bf16.mxu0 0
    %286 = vmatmul.mubr.bf16.gmra.mrb[0].mxu0 %v117
    %v287 = vpop.f32.mrb[0].mxu0
    %v288 = vadd.f32 %v89, %v287
    %v289 = vpop.f32.mrb[0].mxu0
    %v290 = vadd.f32 %v93, %v289
    %v291 = vpop.f32.mrb[0].mxu0
    %v292 = vadd.f32 %v89, %v291
    %v293 = vpop.f32.mrb[0].mxu0
    %v294 = vadd.f32 %v93, %v293
    %295 = vmatprep.mubr.bf16.mxu0 0
    %296 = vmatmul.mubr.bf16.gmra.mrb[0].mxu0 %v118
    %v297 = vpop.f32.mrb[0].mxu0
    %v298 = vadd.f32 %v89, %v297
    %v299 = vpop.f32.mrb[0].mxu0
    %v300 = vadd.f32 %v93, %v299
    %v301 = vpop.f32.mrb[0].mxu0
    %v302 = vadd.f32 %v89, %v301
    %v303 = vpop.f32.mrb[0].mxu0
    %v304 = vadd.f32 %v93, %v303
    %305 = vmatprep.mubr.bf16.mxu0 0
    %306 = vmatmul.mubr.bf16.gmra.mrb[0].mxu0 %v119
    %v307 = vpop.f32.mrb[0].mxu0
    %v308 = vadd.f32 %v89, %v307
    %v309 = vpop.f32.mrb[0].mxu0
    %v310 = vadd.f32 %v93, %v309
    %v311 = vpop.f32.mrb[0].mxu0
    %v312 = vadd.f32 %v89, %v311
    %v313 = vpop.f32.mrb[0].mxu0
    %v314 = vadd.f32 %v93, %v313
    %315 = vmatprep.mubr.bf16.mxu0 0
    %316 = vmatmul.mubr.bf16.gmra.mrb[0].mxu0 %v120
    %v317 = vpop.f32.mrb[0].mxu0
    %v318 = vadd.f32 %v89, %v317
    %v319 = vpop.f32.mrb[0].mxu0
    %v320 = vadd.f32 %v93, %v319
    %v321 = vpop.f32.mrb[0].mxu0
    %v322 = vadd.f32 %v89, %v321
    %v323 = vpop.f32.mrb[0].mxu0
    %v324 = vadd.f32 %v93, %v323
    %325 = vdwg.mxu0
    %326 = vmatprep.subr.bf16.mxu0 0
    %327 = vmatpush1.bf16.msra.mxu0 %v207
    %328 = vmatprep.subr.bf16.mxu0 0
    %329 = vmatpush1.bf16.msra.mxu0 %v210
    %330 = vmatprep.subr.bf16.mxu0 0
    %331 = vmatpush1.bf16.msra.mxu0 %v213
    %332 = vmatprep.subr.bf16.mxu0 0
    %333 = vmatpush1.bf16.msra.mxu0 %v216
    %334 = vmatprep.subr.bf16.mxu0 0
    %335 = vmatpush1.bf16.msra.mxu0 %v219
    %336 = vmatprep.subr.bf16.mxu0 0
    %337 = vmatpush1.bf16.msra.mxu0 %v222
    %338 = vmatprep.subr.bf16.mxu0 0
    %339 = vmatpush1.bf16.msra.mxu0 %v225
    %340 = vmatprep.subr.bf16.mxu0 0
    %341 = vmatpush1.bf16.msra.mxu0 %v228
    %342 = vmatprep.subr.bf16.mxu0 0
    %343 = vmatpush1.bf16.msra.mxu0 0
    %344 = vmatprep.subr.bf16.mxu0 0
    %345 = vmatpush1.bf16.msra.mxu0 0
    %346 = vmatprep.subr.bf16.mxu0 0
    %347 = vmatpush1.bf16.msra.mxu0 0
    %348 = vmatprep.subr.bf16.mxu0 0
    %349 = vmatpush1.bf16.msra.mxu0 0
    %350 = vmatprep.subr.bf16.mxu0 0
    %351 = vmatpush1.bf16.msra.mxu0 0
    %352 = vmatprep.subr.bf16.mxu0 0
    %353 = vmatpush1.bf16.msra.mxu0 0
    %354 = vmatprep.subr.bf16.mxu0 0
    %355 = vmatpush1.bf16.msra.mxu0 0
    %356 = vmatprep.subr.bf16.mxu0 0
    %357 = vmatpush1.bf16.msra.mxu0 0
    %358 = vmatprep.mubr.bf16.mxu0 0
    %359 = vmatmul.mubr.bf16.gmra.mrb[0].mxu0 %v117
    %v360 = vpop.f32.mrb[0].mxu0
    %v361 = vadd.f32 %v97, %v360
    %v362 = vpop.f32.mrb[0].mxu0
    %v363 = vpop.f32.mrb[0].mxu0
    %v364 = vadd.f32 %v97, %v363
    %v365 = vpop.f32.mrb[0].mxu0
    %366 = vmatprep.mubr.bf16.mxu0 0
    %367 = vmatmul.mubr.bf16.gmra.mrb[0].mxu0 %v118
    %v368 = vpop.f32.mrb[0].mxu0
    %v369 = vadd.f32 %v97, %v368
    %v370 = vpop.f32.mrb[0].mxu0
    %v371 = vpop.f32.mrb[0].mxu0
    %v372 = vadd.f32 %v97, %v371
    %v373 = vpop.f32.mrb[0].mxu0
    %374 = vmatprep.mubr.bf16.mxu0 0
    %375 = vmatmul.mubr.bf16.gmra.mrb[0].mxu0 %v119
    %v376 = vpop.f32.mrb[0].mxu0
    %v377 = vadd.f32 %v97, %v376
    %v378 = vpop.f32.mrb[0].mxu0
    %v379 = vpop.f32.mrb[0].mxu0
    %v380 = vadd.f32 %v97, %v379
    %v381 = vpop.f32.mrb[0].mxu0
    %382 = vmatprep.mubr.bf16.mxu0 0
    %383 = vmatmul.mubr.bf16.gmra.mrb[0].mxu0 %v120
    %v384 = vpop.f32.mrb[0].mxu0
    %v385 = vadd.f32 %v97, %v384
    %v386 = vpop.f32.mrb[0].mxu0
    %v387 = vpop.f32.mrb[0].mxu0
    %v388 = vadd.f32 %v97, %v387
    %v389 = vpop.f32.mrb[0].mxu0
    %390 = vdwg.mxu0
    %v391 = vpack.c.bf16 %v292, %v288
    %v392 = vpack.c.bf16 %v294, %v290
    %v393 = vpack.c.bf16 %v364, %v361
    %v394 = vpack.c.bf16 %v302, %v298
    %v395 = vpack.c.bf16 %v304, %v300
    %v396 = vpack.c.bf16 %v372, %v369
    %v397 = vpack.c.bf16 %v312, %v308
    %v398 = vpack.c.bf16 %v314, %v310
    %v399 = vpack.c.bf16 %v380, %v377
    %v400 = vpack.c.bf16 %v322, %v318
    %v401 = vpack.c.bf16 %v324, %v320
    %v402 = vpack.c.bf16 %v388, %v385
    %v415 = vunpack.c.l.b16 %v391
    %v416 = vunpack.c.l.b16 %v392
    %v417 = vunpack.c.l.b16 %v393
    %v418 = vunpack.c.h.b16 %v391
    %v419 = vunpack.c.h.b16 %v392
    %v420 = vunpack.c.h.b16 %v393
    %v421 = vunpack.c.l.b16 %v394
    %v422 = vunpack.c.l.b16 %v395
    %v423 = vunpack.c.l.b16 %v396
    %v424 = vunpack.c.h.b16 %v394
    %v425 = vunpack.c.h.b16 %v395
    %v426 = vunpack.c.h.b16 %v396
    %v427 = vunpack.c.l.b16 %v397
    %v428 = vunpack.c.l.b16 %v398
    %v429 = vunpack.c.l.b16 %v399
    %v430 = vunpack.c.h.b16 %v397
    %v431 = vunpack.c.h.b16 %v398
    %v432 = vunpack.c.h.b16 %v399
    %v433 = vunpack.c.l.b16 %v400
    %v434 = vunpack.c.l.b16 %v401
    %v435 = vunpack.c.l.b16 %v402
    %v436 = vunpack.c.h.b16 %v400
    %v437 = vunpack.c.h.b16 %v401
    %v438 = vunpack.c.h.b16 %v402
    %v439 = vpack.c.b16 %v416, %v415
    %v440 = vpack.c.b16 %v417, %v417
    %v441 = vpack.c.b16 %v419, %v418
    %v442 = vpack.c.b16 %v420, %v420
    %v443 = vpack.c.b16 %v422, %v421
    %v444 = vpack.c.b16 %v423, %v423
    %v445 = vpack.c.b16 %v425, %v424
    %v446 = vpack.c.b16 %v426, %v426
    %v447 = vpack.c.b16 %v428, %v427
    %v448 = vpack.c.b16 %v429, %v429
    %v449 = vpack.c.b16 %v431, %v430
    %v450 = vpack.c.b16 %v432, %v432
    %v451 = vpack.c.b16 %v434, %v433
    %v452 = vpack.c.b16 %v435, %v435
    %v453 = vpack.c.b16 %v437, %v436
    %v454 = vpack.c.b16 %v438, %v438
    %471 = vst [vmem:[#allocation7] sm:$0xff] %v439
    %472 = vst [vmem:[#allocation7 + $0x8] sm:$0xf] %v440
    %473 = vst [vmem:[#allocation7 + $0xc] sm:$0xff] %v441
    %474 = vst [vmem:[#allocation7 + $0x14] sm:$0xf] %v442
    %475 = vst [vmem:[#allocation7 + $0x18] sm:$0xff] %v443
    %476 = vst [vmem:[#allocation7 + $0x20] sm:$0xf] %v444
    %477 = vst [vmem:[#allocation7 + $0x24] sm:$0xff] %v445
    %478 = vst [vmem:[#allocation7 + $0x2c] sm:$0xf] %v446
    %479 = vst [vmem:[#allocation7 + $0x30] sm:$0xff] %v447
    %480 = vst [vmem:[#allocation7 + $0x38] sm:$0xf] %v448
    %481 = vst [vmem:[#allocation7 + $0x3c] sm:$0xff] %v449
    %482 = vst [vmem:[#allocation7 + $0x44] sm:$0xf] %v450
    %483 = vst [vmem:[#allocation7 + $0x48] sm:$0xff] %v451
    %484 = vst [vmem:[#allocation7 + $0x50] sm:$0xf] %v452
    %485 = vst [vmem:[#allocation7 + $0x54] sm:$0xff] %v453
    %486 = vst [vmem:[#allocation7 + $0x5c] sm:$0xf] %v454
    // Predicated region
    $region22: #{tpu_custom_call.1} parent=1 // pred_check
      _
    $region23: #{tpu_custom_call.1} parent=1 // pred_check_branch
      %488 = sbr.rel (0) target = $region25
    $region24: #{tpu_custom_call.1} parent=1 // pred_region
      %s490 = ssub.s32 1536, 1536
      %491 = vsyncadd [#allocation4], %s490
      %s492 = sshll.u32 [#allocation7], 4
      %s493 = int_to_ptr.vmem [resolvable:$true] %s492
      %498 = dma.vmem_to_hbm [thread:$0]  %s493, 1536, %s3, [#allocation4], 192, 192, 12
    $region25: #{tpu_custom_call.1} parent=1 // pred_fallthru
      _
    // Predicated region
    $region26: #{tpu_custom_call.1} parent=1 // pred_check
      _
    $region27: #{tpu_custom_call.1} parent=1 // pred_check_branch
      %500 = sbr.rel (0) target = $region29
    $region28: #{tpu_custom_call.1} parent=1 // pred_region
      %501 = dma.done [#allocation4], 1536
    $region29: #{tpu_custom_call.1} parent=1 // pred_fallthru
      _
    %502 = vsyncpa [#allocation3], 1
    %503 = vsyncpa [#allocation6], 1
    %504 = vsyncpa [#allocation4], 1

</llo_original>
